<compile_context>
chip_gen: v7x
topology: tpu7x:2x2x1
jax: 0.10.0
libtpu: 0.0.40
codegen_flags: <defaults>
</compile_context>

<pallas_src>
import jax
import jax.numpy as jnp
from jax.experimental import pallas as pl
from jax.experimental.pallas import tpu as pltpu


def _deconv_bn_relu_kernel(w_ref, b_ref, p_ref, o_ref):
    # w_ref: (M, Kc)   phase-packed deconv weight with BN scale folded in
    # b_ref: (M, 1)    folded BatchNorm bias (per phase*C_out channel)
    # p_ref: (Kc, T)   im2col patches of one image, spatial positions in lanes
    # o_ref: (M, T)    phase*C_out channels in sublanes, spatial in lanes
    acc = jnp.dot(w_ref[...], p_ref[...], preferred_element_type=jnp.float32)
    o_ref[...] = jnp.maximum(acc + b_ref[...], 0.0).astype(o_ref.dtype)


def basic_deconv2d(x_nchw, weight, bn_gamma, bn_beta, bn_mean, bn_var, *,
                   stride=2, padding=1, output_padding=0, eps=1e-5,
                   max_lane_tile=1024):
    """Forward of BasicDeconv2d: ConvTranspose2d(bias=False) + BN(eval) + ReLU."""
    N, C_in, H, W = x_nchw.shape
    C_in_w, C_out, KH, KW = weight.shape          # PyTorch layout (C_in, C_out, K, K)
    assert C_in == C_in_w and KH == KW
    K, s, p, op = KH, stride, padding, output_padding
    H_out = (H - 1) * s - 2 * p + K + op
    W_out = (W - 1) * s - 2 * p + K + op

    # ---- static sub-pixel bookkeeping: oh = s*oi + r, ih = oi - d, kh = s*d + r + p
    d_min = min(-((r + p) // s) for r in range(s))
    d_max = max((K - 1 - r - p) // s for r in range(s))
    KE = d_max - d_min + 1                        # effective window on un-dilated input
    OI = -(-H_out // s)                           # ceil(H_out / s)
    OJ = -(-W_out // s)
    pad_lo = max(0, d_max)
    pad_hi_h = max(0, (OI - 1 - d_min) - (H - 1))
    pad_hi_w = max(0, (OJ - 1 - d_min) - (W - 1))
    off = pad_lo - d_max                          # >= 0

    # ---- fold BatchNorm (eval): y = scale*conv(x) + bias; scale goes into the weight
    inv_std = 1.0 / jnp.sqrt(bn_var.astype(jnp.float32) + eps)
    scale = bn_gamma.astype(jnp.float32) * inv_std
    bias = bn_beta.astype(jnp.float32) - bn_mean.astype(jnp.float32) * scale

    # ---- phase-packed weight: Wc[(rh*s+rw)*C_out + co, (a*KE+b)*C_in + ci]
    M = s * s * C_out
    Kc = KE * KE * C_in
    w_f32 = weight.astype(jnp.float32)
    Wc = jnp.zeros((s, s, C_out, KE, KE, C_in), jnp.float32)
    for rh in range(s):
        for a in range(KE):
            kh = s * (d_max - a) + rh + p
            if not (0 <= kh < K):
                continue
            for rw in range(s):
                for b in range(KE):
                    kw = s * (d_max - b) + rw + p
                    if not (0 <= kw < K):
                        continue
                    Wc = Wc.at[rh, rw, :, a, b, :].set(w_f32[:, :, kh, kw].T)
    Wc = (Wc * scale[None, None, :, None, None, None]).reshape(M, Kc)
    bias_m = jnp.tile(bias, s * s).reshape(M, 1)

    # ---- im2col of the UN-dilated input (no structural zeros), spatial -> lanes
    x = x_nchw.astype(jnp.float32)
    x_p = jnp.pad(x, ((0, 0), (0, 0), (pad_lo, pad_hi_h), (pad_lo, pad_hi_w)))
    slabs = [x_p[:, :, a + off:a + off + OI, b + off:b + off + OJ]
             for a in range(KE) for b in range(KE)]
    P = jnp.stack(slabs, axis=1).reshape(N, Kc, OI * OJ)

    SP = OI * OJ
    T = max_lane_tile if SP >= max_lane_tile else ((SP + 127) // 128) * 128
    SP_pad = ((SP + T - 1) // T) * T
    if SP_pad != SP:
        P = jnp.pad(P, ((0, 0), (0, 0), (0, SP_pad - SP)))
    n_tiles = SP_pad // T

    # ---- Pallas hot path: one lane-dense matmul + bias + ReLU per grid step
    out = pl.pallas_call(
        _deconv_bn_relu_kernel,
        out_shape=jax.ShapeDtypeStruct((N, M, SP_pad), x_nchw.dtype),
        grid=(N, n_tiles),
        in_specs=[
            pl.BlockSpec((M, Kc), lambda n, t: (0, 0)),             # weight (grid-invariant)
            pl.BlockSpec((M, 1), lambda n, t: (0, 0)),              # bias   (grid-invariant)
            pl.BlockSpec((pl.Squeezed(), Kc, T), lambda n, t: (n, 0, t)),
        ],
        out_specs=pl.BlockSpec((pl.Squeezed(), M, T), lambda n, t: (n, 0, t)),
        compiler_params=pltpu.CompilerParams(
            dimension_semantics=("parallel", "parallel")),
    )(Wc, bias_m, P)

    # ---- pixel shuffle (phase -> spatial) back to NCHW, crop padding
    y = out[:, :, :SP].reshape(N, s, s, C_out, OI, OJ)
    y = y.transpose(0, 3, 4, 1, 5, 2).reshape(N, C_out, OI * s, OJ * s)
    return y[:, :, :H_out, :W_out]


def _reference(x, weight, gamma, beta, mean, var, *, stride, padding,
               output_padding, eps=1e-5):
    """Pure-JAX reference for ConvTranspose2d + BN(eval) + ReLU (NCHW)."""
    K = weight.shape[2]
    w_conv = jnp.transpose(weight, (1, 0, 2, 3))[:, :, ::-1, ::-1]  # (C_out,C_in,K,K)
    pad = K - 1 - padding
    y = jax.lax.conv_general_dilated(
        x, w_conv, window_strides=(1, 1),
        padding=((pad, pad + output_padding), (pad, pad + output_padding)),
        lhs_dilation=(stride, stride),
        dimension_numbers=("NCHW", "OIHW", "NCHW"))
    inv_std = 1.0 / jnp.sqrt(var + eps)
    scale = (gamma * inv_std).reshape(1, -1, 1, 1)
    bias = (beta - gamma * mean * inv_std).reshape(1, -1, 1, 1)
    return jnp.maximum(y * scale + bias, 0.0)


if __name__ == "__main__":
    # BasicDeconv2d(4, 8, kernel_size=4, stride=2, padding=1, bias=False,
    #               norm_layer=nn.BatchNorm2d, act_layer=nn.ReLU), eval mode.
    N, C_in, H, W = 2, 4, 16, 16
    C_out, K, stride, padding, output_padding = 8, 4, 2, 1, 0

    key = jax.random.PRNGKey(0)
    k1, k2, k3, k4, k5, k6 = jax.random.split(key, 6)
    x = jax.random.normal(k1, (N, C_in, H, W), jnp.float32)
    weight = jax.random.normal(k2, (C_in, C_out, K, K), jnp.float32) * 0.1
    bn_gamma = 1.0 + 0.1 * jax.random.normal(k3, (C_out,), jnp.float32)
    bn_beta = 0.1 * jax.random.normal(k4, (C_out,), jnp.float32)
    bn_mean = 0.1 * jax.random.normal(k5, (C_out,), jnp.float32)
    bn_var = jax.nn.softplus(jax.random.normal(k6, (C_out,), jnp.float32)) + 0.5

    out = basic_deconv2d(x, weight, bn_gamma, bn_beta, bn_mean, bn_var,
                         stride=stride, padding=padding,
                         output_padding=output_padding)
    out = jax.block_until_ready(out)

    H_out = (H - 1) * stride - 2 * padding + K + output_padding
    W_out = (W - 1) * stride - 2 * padding + K + output_padding
    assert out.shape == (N, C_out, H_out, W_out), out.shape

    ref = _reference(x, weight, bn_gamma, bn_beta, bn_mean, bn_var,
                     stride=stride, padding=padding,
                     output_padding=output_padding)
    assert jnp.allclose(out, ref, atol=1e-4, rtol=1e-4), \
        float(jnp.max(jnp.abs(out - ref)))

    print("KERNEL_OK")
</pallas_src>

<mosaic_0001>
module attributes {stable_mosaic.version = 11 : i64} {
  func.func @_deconv_bn_relu_kernel(%arg0: i32, %arg1: i32, %arg2: memref<32x36xf32, #tpu.memory_space<vmem>>, %arg3: memref<32x1xf32, #tpu.memory_space<vmem>>, %arg4: memref<1x36x256xf32, #tpu.memory_space<vmem>>, %arg5: memref<1x32x256xf32, #tpu.memory_space<vmem>>) attributes {dimension_semantics = [#tpu.dimension_semantics<parallel>, #tpu.dimension_semantics<parallel>], iteration_bounds = array<i64: 2, 1>, scalar_prefetch = 0 : i64, scratch_operands = 0 : i64, tpu.core_type = #tpu.core_type<tc>, window_params = [{pipeline_mode = #tpu.pipeline_mode<synchronous>, transform_indices = @transform_0, window_bounds = array<i64: 32, 36>}, {pipeline_mode = #tpu.pipeline_mode<synchronous>, transform_indices = @transform_1, window_bounds = array<i64: 32, 1>}, {transform_indices = @transform_2, window_bounds = array<i64: 1, 36, 256>}, {transform_indices = @transform_3, window_bounds = array<i64: 1, 32, 256>}]} {
    %c0 = arith.constant 0 : index
    %c0_0 = arith.constant 0 : index
    %0 = vector.load %arg2[%c0, %c0_0] : memref<32x36xf32, #tpu.memory_space<vmem>>, vector<32x36xf32>
    %c0_1 = arith.constant 0 : index
    %c0_2 = arith.constant 0 : index
    %c0_3 = arith.constant 0 : index
    %1 = vector.load %arg4[%c0_1, %c0_2, %c0_3] : memref<1x36x256xf32, #tpu.memory_space<vmem>>, vector<1x36x256xf32>
    %2 = vector.shape_cast %1 : vector<1x36x256xf32> to vector<36x256xf32>
    %cst = arith.constant dense<0.000000e+00> : vector<32x256xf32>
    %3 = tpu.matmul %0, %2, %cst {dimension_numbers = #tpu.dot_dimension_numbers<[1], [0], [0], [1], [0, 0, 1, 1], [], []>} : vector<32x36xf32>, vector<36x256xf32>, vector<32x256xf32> -> vector<32x256xf32>
    %c0_4 = arith.constant 0 : index
    %c0_5 = arith.constant 0 : index
    %4 = vector.load %arg3[%c0_4, %c0_5] : memref<32x1xf32, #tpu.memory_space<vmem>>, vector<32x1xf32>
    %5 = vector.broadcast %4 : vector<32x1xf32> to vector<32x256xf32>
    %6 = arith.addf %3, %5 : vector<32x256xf32>
    %cst_6 = arith.constant 0.000000e+00 : f32
    %7 = vector.broadcast %cst_6 : f32 to vector<32x256xf32>
    %8 = arith.maximumf %6, %7 : vector<32x256xf32>
    %c0_7 = arith.constant 0 : index
    %c0_8 = arith.constant 0 : index
    %c0_9 = arith.constant 0 : index
    %9 = vector.load %arg5[%c0_7, %c0_8, %c0_9] : memref<1x32x256xf32, #tpu.memory_space<vmem>>, vector<1x32x256xf32>
    %10 = vector.shape_cast %9 : vector<1x32x256xf32> to vector<32x256xf32>
    %11 = vector.shape_cast %8 : vector<32x256xf32> to vector<1x32x256xf32>
    tpu.vector_store %arg5[%c0_7, %c0_8, %c0_9], %11 {strides = array<i32>} : memref<1x32x256xf32, #tpu.memory_space<vmem>>, vector<1x32x256xf32>,
    return
  }
  func.func @transform_0(%arg0: i32, %arg1: i32) -> (i32, i32) {
    %c0_i32 = arith.constant 0 : i32
    %c0_i32_0 = arith.constant 0 : i32
    %c0_i32_1 = arith.constant 0 : i32
    return %c0_i32, %c0_i32_0 : i32, i32
  }
  func.func @transform_1(%arg0: i32, %arg1: i32) -> (i32, i32) {
    %c0_i32 = arith.constant 0 : i32
    %c0_i32_0 = arith.constant 0 : i32
    %c0_i32_1 = arith.constant 0 : i32
    return %c0_i32, %c0_i32_0 : i32, i32
  }
  func.func @transform_2(%arg0: i32, %arg1: i32) -> (i32, i32, i32) {
    %c0_i32 = arith.constant 0 : i32
    %c0_i32_0 = arith.constant 0 : i32
    return %arg0, %c0_i32, %arg1 : i32, i32, i32
  }
  func.func @transform_3(%arg0: i32, %arg1: i32) -> (i32, i32, i32) {
    %c0_i32 = arith.constant 0 : i32
    %c0_i32_0 = arith.constant 0 : i32
    return %arg0, %c0_i32, %arg1 : i32, i32, i32
  }
}

</mosaic_0001>

<llo_original>
// kernel: tpu_custom_call.1
$region0: #{tpu_custom_call.1}
  #allocation0 [shape = 'u32[]', space=smem, size = 0x4, offset = 0x4, fixed_abs, tag = 'smem constant byte address 0x4 - core index']
  #allocation1 [shape = 'u32[144,128]{1,0:T(1,128)}', space=vmem, size = 0x12000, scoped, tag = 'internal scratch']
  %s0 = inlined_call_operand.vmem [shape: f32[32,36], index: 0, kind: input, shape index: {}]
  %s1 = inlined_call_operand.vmem [shape: f32[32,1], index: 1, kind: input, shape index: {}]
  %s2 = inlined_call_operand.vmem [shape: f32[2,36,256], index: 2, kind: input, shape index: {}]
  %s3 = inlined_call_operand.hbm [shape: f32[2,32,256], index: 3, kind: output, shape index: {}]
  %s4 = sld [smem:[#allocation0]]
  $region45: #{tpu_custom_call.1} parent=0
    _
  %s6 = ssub.s32 1, %s4
  %s7 = scalar_select 0, %s6, %s4
  $region1: #{tpu_custom_call.1} parent=0
    #allocation2 [shape = 'u8[65536]{0}', space=vmem, size = 0x10000, scoped, tag = 'output window, operand 0']
    #allocation3 [shape = 's32[2]{0}', space=sflag, size = 0x8, scoped, tag = 'scoped memory for tpu_custom_call.1']
    %8 = vsyncpa [#allocation3], 0
    %s9 = scalar_lea.sflag [#allocation3], 1
    %10 = vsyncpa %s9, 0
    loop: start=0, step=1, limit=4
    $region2: #{tpu_custom_call.1} parent=1 // loop_pre_header
      _
    $region3: #{tpu_custom_call.1} parent=1 // loop_header
      %s12 = sphi 0, %s16
      %p13 = scmp.ge.s32.totalorder %s12, 4
      %s19 = sphi 0, %s31
      %s20 = sphi 0, %s27
      %s21 = sphi 0, %s19
      %s22 = sphi 0, %s20
      %s23 = sphi 0, %s21
      %s24 = sphi 0, %s22
      %s32 = sphi 0, %s32
      %s34 = sphi 0, %s32
      %s35 = sphi 0, %s34
      %s49 = sphi 0, %s35
      %s53 = sphi 0, %s53
      %s55 = sphi 0, %s53
      %s56 = sphi 0, %s55
      %s70 = sphi 0, %s56
      %s78 = sphi 0, %s80
      %s81 = sphi 0, %s78
      %s82 = sphi 0, %s81
      %s98 = sphi 0, %s82
      %s106 = sphi 0, %s108
      %s109 = sphi 0, %s106
      %s110 = sphi 0, %s109
      %s126 = sphi 0, %s110
    $region4: #{tpu_custom_call.1} parent=1 // loop_header_branch
      %15 = sbr.rel (%p13) target = $region8
    $region5: #{tpu_custom_call.1} parent=1 // loop_body
      %s17 = ssub.s32 %s12, 1
      %s18 = ssub.s32 %s12, 2
      %s25 = sadd.s32 1, %s20
      %p26 = scmp.ge.s32.totalorder %s25, 1
      %s27 = scalar_select %p26, 0, %s25
      %s28 = sadd.s32 1, %s19
      %s29 = scalar_select %p26, %s28, %s19
      %p30 = scmp.ge.s32.totalorder %s29, 2
      %s31 = scalar_select %p30, 0, %s29
      %s33 = sadd.s32 %s32, 1
      %p36 = scmp.eq.s32.totalorder %s12, 1
      %p37 = scmp.ne.s32.totalorder %s32, %s34
      %p38 = scmp.eq.s32.totalorder %s12, 0
      %p39 = por %p37, %p38
      %p40 = scmp.ne.s32.totalorder %s32, %s34
      %p41 = scmp.eq.s32.totalorder %s17, 1
      %p42 = por %p40, %p41
      %p43 = scmp.ne.s32.totalorder %s34, %s35
      %p44 = scmp.eq.s32.totalorder %s17, 0
      %p45 = por %p43, %p44
      %p46 = scmp.ne.s32.totalorder %s34, %s35
      %p47 = scmp.eq.s32.totalorder %s18, 1
      %p48 = por %p46, %p47
      %p50 = scmp.ne.s32.totalorder %s35, %s49
      %p51 = scmp.eq.s32.totalorder %s18, 0
      %p52 = por %p50, %p51
      %s54 = sadd.s32 %s53, 1
      %p57 = scmp.eq.s32.totalorder %s12, 1
      %p58 = scmp.ne.s32.totalorder %s53, %s55
      %p59 = scmp.eq.s32.totalorder %s12, 0
      %p60 = por %p58, %p59
      %p61 = scmp.ne.s32.totalorder %s53, %s55
      %p62 = scmp.eq.s32.totalorder %s17, 1
      %p63 = por %p61, %p62
      %p64 = scmp.ne.s32.totalorder %s55, %s56
      %p65 = scmp.eq.s32.totalorder %s17, 0
      %p66 = por %p64, %p65
      %p67 = scmp.ne.s32.totalorder %s55, %s56
      %p68 = scmp.eq.s32.totalorder %s18, 1
      %p69 = por %p67, %p68
      %p71 = scmp.ne.s32.totalorder %s56, %s70
      %p72 = scmp.eq.s32.totalorder %s18, 0
      %p73 = por %p71, %p72
      %s74 = ssub.s32 %s19, %s31
      %s75 = ssub.s32 %s20, %s27
      %s76 = sor.u32 %s74, %s75
      %p77 = scmp.eq.s32.totalorder %s76, 0
      %s79 = sadd.s32 %s78, 1
      %s80 = scalar_select %p77, %s78, %s79
      %p83 = pneg %p77
      %p84 = scmp.eq.s32.totalorder %s12, 1
      %p85 = por %p83, %p84
      %p86 = scmp.ne.s32.totalorder %s78, %s81
      %p87 = scmp.eq.s32.totalorder %s12, 0
      %p88 = por %p86, %p87
      %p89 = scmp.ne.s32.totalorder %s78, %s81
      %p90 = scmp.eq.s32.totalorder %s17, 1
      %p91 = por %p89, %p90
      %p92 = scmp.ne.s32.totalorder %s81, %s82
      %p93 = scmp.eq.s32.totalorder %s17, 0
      %p94 = por %p92, %p93
      %p95 = scmp.ne.s32.totalorder %s81, %s82
      %p96 = scmp.eq.s32.totalorder %s18, 1
      %p97 = por %p95, %p96
      %p99 = scmp.ne.s32.totalorder %s82, %s98
      %p100 = scmp.eq.s32.totalorder %s18, 0
      %p101 = por %p99, %p100
      %s102 = ssub.s32 %s19, %s31
      %s103 = ssub.s32 %s20, %s27
      %s104 = sor.u32 %s102, %s103
      %p105 = scmp.eq.s32.totalorder %s104, 0
      %s107 = sadd.s32 %s106, 1
      %s108 = scalar_select %p105, %s106, %s107
      %p111 = pneg %p105
      %p112 = scmp.eq.s32.totalorder %s12, 1
      %p113 = por %p111, %p112
      %p114 = scmp.ne.s32.totalorder %s106, %s109
      %p115 = scmp.eq.s32.totalorder %s12, 0
      %p116 = por %p114, %p115
      %p117 = scmp.ne.s32.totalorder %s106, %s109
      %p118 = scmp.eq.s32.totalorder %s17, 1
      %p119 = por %p117, %p118
      %p120 = scmp.ne.s32.totalorder %s109, %s110
      %p121 = scmp.eq.s32.totalorder %s17, 0
      %p122 = por %p120, %p121
      %p123 = scmp.ne.s32.totalorder %s109, %s110
      %p124 = scmp.eq.s32.totalorder %s18, 1
      %p125 = por %p123, %p124
      %p127 = scmp.ne.s32.totalorder %s110, %s126
      %p128 = scmp.eq.s32.totalorder %s18, 0
      %p129 = por %p127, %p128
      %p130 = scmp.le.s32.totalorder 1, %s12
      %p131 = scmp.lt.s32.totalorder %s12, 3
      %p132 = pnand %p130, %p131
      %p133 = pneg %p132
      // Predicated region
      $region9: #{tpu_custom_call.1} parent=5 // pred_check
        _
      $region10: #{tpu_custom_call.1} parent=5 // pred_check_branch
        %135 = sbr.rel (%p132) target = $region12
      $region11: #{tpu_custom_call.1} parent=5 // pred_region
        %s136 = ssub.s32 %s12, 1
        // Predicated region
        $region13: #{tpu_custom_call.1} parent=11 // pred_check
          %p137 = pneg %p45
        $region14: #{tpu_custom_call.1} parent=11 // pred_check_branch
          %139 = sbr.rel (%p137) target = $region16
        $region15: #{tpu_custom_call.1} parent=11 // pred_region
          _
        $region16: #{tpu_custom_call.1} parent=11 // pred_fallthru
          _
        // Predicated region
        $region17: #{tpu_custom_call.1} parent=11 // pred_check
          %p140 = pneg %p66
        $region18: #{tpu_custom_call.1} parent=11 // pred_check_branch
          %142 = sbr.rel (%p140) target = $region20
        $region19: #{tpu_custom_call.1} parent=11 // pred_region
          _
        $region20: #{tpu_custom_call.1} parent=11 // pred_fallthru
          _
      $region12: #{tpu_custom_call.1} parent=5 // pred_fallthru
        _
      %p143 = scmp.lt.s32.totalorder %s12, 2
      // Predicated region
      $region21: #{tpu_custom_call.1} parent=5 // pred_check
        %p144 = pneg %p143
      $region22: #{tpu_custom_call.1} parent=5 // pred_check_branch
        %146 = sbr.rel (%p144) target = $region24
      $region23: #{tpu_custom_call.1} parent=5 // pred_region
        // Predicated region
        $region25: #{tpu_custom_call.1} parent=23 // pred_check
          %p147 = pneg %p88
        $region26: #{tpu_custom_call.1} parent=23 // pred_check_branch
          %149 = sbr.rel (%p147) target = $region28
        $region27: #{tpu_custom_call.1} parent=23 // pred_region
          %s150 = smul.u32 2, %s20
          %p151 = scmp.lt.s32.totalorder %s19, 1
          %s152 = scalar_select %p151, %s19, 1
          %p153 = scmp.lt.s32.totalorder %s150, 1
          %s154 = scalar_select %p153, %s150, 1
          %s155 = smul.addr %s152, 10
          %s156 = sadd.s32 %s154, %s155
          %s157 = smul.addr %s156, 8
          %s158 = scalar_lea.vmem %s2, %s157
          %s159 = smul.u32 2, %s20
        $region28: #{tpu_custom_call.1} parent=23 // pred_fallthru
          _
      $region24: #{tpu_custom_call.1} parent=5 // pred_fallthru
        _
      %p160 = scmp.le.s32.totalorder 1, %s12
      %p161 = scmp.lt.s32.totalorder %s12, 3
      %p162 = pnand %p160, %p161
      %p163 = pneg %p162
      // Predicated region
      $region29: #{tpu_custom_call.1} parent=5 // pred_check
        _
      $region30: #{tpu_custom_call.1} parent=5 // pred_check_branch
        %165 = sbr.rel (%p162) target = $region32
      $region31: #{tpu_custom_call.1} parent=5 // pred_region
        %s166 = ssub.s32 %s12, 1
        %p167 = pneg %p45
        %p168 = pneg %p42
        %p169 = pneg %p66
        %p170 = pneg %p63
        %s171 = smul.u32 2, %s22
        %p172 = scmp.lt.s32.totalorder %s21, 1
        %s173 = scalar_select %p172, %s21, 1
        %p174 = scmp.lt.s32.totalorder %s171, 1
        %s175 = scalar_select %p174, %s171, 1
        %s176 = smul.addr %s173, 10
        %s177 = sadd.s32 %s175, %s176
        %s178 = smul.addr %s177, 8
        %s179 = scalar_lea.vmem %s2, %s178
        %p180 = pneg %p94
        %p181 = pneg %p91
        %p182 = pneg %p122
        %p183 = pneg %p119
        %s184 = sand.u32 %s109, 1
        %s185 = scalar_lea.sflag [#allocation3], %s184
        %s186 = sand.u32 %s109, 1
        %s187 = smul.addr %s186, 64
        %s188 = scalar_lea.vmem [#allocation2], %s187
        %s189 = smul.u32 2, %s22
        %p190 = scmp.lt.s32.totalorder %s21, 1
        %s191 = scalar_select %p190, %s21, 1
        %p192 = scmp.lt.s32.totalorder %s189, 1
        %s193 = scalar_select %p192, %s189, 1
        %s194 = smul.addr %s191, 10
        %s195 = sadd.s32 %s193, %s194
        %s196 = smul.addr %s195, 8
        %s197 = scalar_lea.vmem %s2, %s196
        %s198 = smul.u32 2, %s22
        %s199 = smul.u32 2, %s22
        %v200 = vld [vmem:[%s0] sm:$0xff]
        %v201 = vld [vmem:[%s0 + $0x8] sm:$0xff]
        %v202 = vld [vmem:[%s0 + $0x10] sm:$0xff]
        %v203 = vld [vmem:[%s0 + $0x18] sm:$0xff]
        %v204 = vld [vmem:[%s197] sm:$0xff]
        %v205 = vld [vmem:[%s197 + $0x8] sm:$0xff]
        %v206 = vld [vmem:[%s197 + $0x10] sm:$0xff]
        %v207 = vld [vmem:[%s197 + $0x18] sm:$0xff]
        %v208 = vld [vmem:[%s197 + $0x20] sm:$0xff]
        %v209 = vld [vmem:[%s197 + $0x28] sm:$0xff]
        %v210 = vld [vmem:[%s197 + $0x30] sm:$0xff]
        %v211 = vld [vmem:[%s197 + $0x38] sm:$0xff]
        %v212 = vld [vmem:[%s197 + $0x40] sm:$0xf]
        %v213 = vld [vmem:[%s197 + $0x48] sm:$0xf]
        %v214 = vld [vmem:[%s1] sm:$0xff]
        %v215 = vld [vmem:[%s1 + $0x8] sm:$0xff]
        %v216 = vld [vmem:[%s1 + $0x10] sm:$0xff]
        %v217 = vld [vmem:[%s1 + $0x18] sm:$0xff]
        %219 = vset.pattern.permute.xlu0 0
        %220 = vperm.xlu0 %219, %v214
        %v221 = vpop.permute.xlu0 %220
        %224 = vset.pattern.permute.xlu0 0
        %225 = vperm.xlu0 %224, %v215
        %v226 = vpop.permute.xlu0 %225
        %229 = vset.pattern.permute.xlu0 0
        %230 = vperm.xlu0 %229, %v216
        %v231 = vpop.permute.xlu0 %230
        %234 = vset.pattern.permute.xlu0 0
        %235 = vperm.xlu0 %234, %v217
        %v236 = vpop.permute.xlu0 %235
        %vm238 = vcmask 293888
        %v240 = vsel %vm238, %v200, 0
        %v243 = vsel %vm238, %v201, 0
        %v246 = vsel %vm238, %v202, 0
        %v249 = vsel %vm238, %v203, 0
        %vm251 = vcmask 1043456
        %v253 = vsel %vm251, %v212, 0
        %v256 = vsel %vm251, %v213, 0
        %258 = vmatprep.subr.mxu0 %v205
        %259 = vmatpush1.msra.mxu0 %v204
        %260 = vmatprep.subr.mxu0 %v207
        %261 = vmatpush1.msra.mxu0 %v206
        %262 = vmatprep.subr.mxu0 %v209
        %263 = vmatpush1.msra.mxu0 %v208
        %264 = vmatprep.subr.mxu0 %v211
        %265 = vmatpush1.msra.mxu0 %v210
        %266 = vmatprep.subr.mxu0 %v256
        %267 = vmatpush1.msra.mxu0 %v253
        %268 = vmatprep.subr.mxu0 0.0
        %269 = vmatpush1.msra.mxu0 0.0
        %270 = vmatprep.subr.mxu0 0.0
        %271 = vmatpush1.msra.mxu0 0.0
        %272 = vmatprep.subr.mxu0 0.0
        %273 = vmatpush1.msra.mxu0 0.0
        %274 = vmatprep.subr.mxu0 0.0
        %275 = vmatpush1.msra.mxu0 0.0
        %276 = vmatprep.subr.mxu0 0.0
        %277 = vmatpush1.msra.mxu0 0.0
        %278 = vmatprep.subr.mxu0 0.0
        %279 = vmatpush1.msra.mxu0 0.0
        %280 = vmatprep.subr.mxu0 0.0
        %281 = vmatpush1.msra.mxu0 0.0
        %282 = vmatprep.subr.mxu0 0.0
        %283 = vmatpush1.msra.mxu0 0.0
        %284 = vmatprep.subr.mxu0 0.0
        %285 = vmatpush1.msra.mxu0 0.0
        %286 = vmatprep.subr.mxu0 0.0
        %287 = vmatpush1.msra.mxu0 0.0
        %288 = vmatprep.subr.mxu0 0.0
        %289 = vmatpush1.msra.mxu0 0.0
        %290 = vmatprep.subr.mxu0 0.0
        %291 = vmatpush1.msra.mxu0 0.0
        %292 = vmatprep.subr.mxu0 0.0
        %293 = vmatpush1.msra.mxu0 0.0
        %294 = vmatprep.subr.mxu0 0.0
        %295 = vmatpush1.msra.mxu0 0.0
        %296 = vmatprep.subr.mxu0 0.0
        %297 = vmatpush1.msra.mxu0 0.0
        %298 = vmatprep.subr.mxu0 0.0
        %299 = vmatpush1.msra.mxu0 0.0
        %300 = vmatprep.subr.mxu0 0.0
        %301 = vmatpush1.msra.mxu0 0.0
        %302 = vmatprep.subr.mxu0 0.0
        %303 = vmatpush1.msra.mxu0 0.0
        %304 = vmatprep.subr.mxu0 0.0
        %305 = vmatpush1.msra.mxu0 0.0
        %306 = vmatprep.subr.mxu0 0.0
        %307 = vmatpush1.msra.mxu0 0.0
        %308 = vmatprep.subr.mxu0 0.0
        %309 = vmatpush1.msra.mxu0 0.0
        %310 = vmatprep.subr.mxu0 0.0
        %311 = vmatpush1.msra.mxu0 0.0
        %312 = vmatprep.subr.mxu0 0.0
        %313 = vmatpush1.msra.mxu0 0.0
        %314 = vmatprep.subr.mxu0 0.0
        %315 = vmatpush1.msra.mxu0 0.0
        %316 = vmatprep.subr.mxu0 0.0
        %317 = vmatpush1.msra.mxu0 0.0
        %318 = vmatprep.subr.mxu0 0.0
        %319 = vmatpush1.msra.mxu0 0.0
        %320 = vmatprep.subr.mxu0 0.0
        %321 = vmatpush1.msra.mxu0 0.0
        %322 = vmatprep.mubr.f32.mxu0 0.0
        %323 = vmatmul.mubr.f32.gmra.mrb[0].mxu0 %v240
        %v324 = vpop.f32.mrb[0].mxu0
        %v325 = vadd.f32 %v221, %v324
        %v326 = vpop.f32.mrb[0].mxu0
        %v327 = vadd.f32 %v221, %v326
        %328 = vmatprep.mubr.f32.mxu0 0.0
        %329 = vmatmul.mubr.f32.gmra.mrb[0].mxu0 %v243
        %v330 = vpop.f32.mrb[0].mxu0
        %v331 = vadd.f32 %v226, %v330
        %v332 = vpop.f32.mrb[0].mxu0
        %v333 = vadd.f32 %v226, %v332
        %334 = vmatprep.mubr.f32.mxu0 0.0
        %335 = vmatmul.mubr.f32.gmra.mrb[0].mxu0 %v246
        %v336 = vpop.f32.mrb[0].mxu0
        %v337 = vadd.f32 %v231, %v336
        %v338 = vpop.f32.mrb[0].mxu0
        %v339 = vadd.f32 %v231, %v338
        %340 = vmatprep.mubr.f32.mxu0 0.0
        %341 = vmatmul.mubr.f32.gmra.mrb[0].mxu0 %v249
        %v342 = vpop.f32.mrb[0].mxu0
        %v343 = vadd.f32 %v236, %v342
        %v344 = vpop.f32.mrb[0].mxu0
        %v345 = vadd.f32 %v236, %v344
        %346 = vdwg.mxu0
        %v347 = vmax.f32 %v325, 0.0
        %v348 = vmax.f32 %v327, 0.0
        %v349 = vmax.f32 %v331, 0.0
        %v350 = vmax.f32 %v333, 0.0
        %v351 = vmax.f32 %v337, 0.0
        %v352 = vmax.f32 %v339, 0.0
        %v353 = vmax.f32 %v343, 0.0
        %v354 = vmax.f32 %v345, 0.0
        %355 = vst [vmem:[%s188] sm:$0xff] %v347
        %356 = vst [vmem:[%s188 + $0x8] sm:$0xff] %v348
        %357 = vst [vmem:[%s188 + $0x10] sm:$0xff] %v349
        %358 = vst [vmem:[%s188 + $0x18] sm:$0xff] %v350
        %359 = vst [vmem:[%s188 + $0x20] sm:$0xff] %v351
        %360 = vst [vmem:[%s188 + $0x28] sm:$0xff] %v352
        %361 = vst [vmem:[%s188 + $0x30] sm:$0xff] %v353
        %362 = vst [vmem:[%s188 + $0x38] sm:$0xff] %v354
        %s363 = sand.u32 %s109, 1
        %s364 = scalar_lea.sflag [#allocation3], %s363
        %s365 = sand.u32 %s109, 1
        %s366 = smul.addr %s365, 64
        %s367 = scalar_lea.vmem [#allocation2], %s366
        // Predicated region
        $region33: #{tpu_custom_call.1} parent=31 // pred_check
          %p368 = pneg %p119
        $region34: #{tpu_custom_call.1} parent=31 // pred_check_branch
          %370 = sbr.rel (%p368) target = $region36
        $region35: #{tpu_custom_call.1} parent=31 // pred_region
          %s371 = smul.u32 2, %s22
          %s373 = ssub.s32 1024, 1024
          %374 = vsyncadd %s364, %s373
          %s375 = smul.addr %s21, 8
          %s376 = sadd.s32 %s371, %s375
          %s377 = smul.addr %s376, 128
          %s378 = scalar_lea.hbm %s3, %s377
          %s379 = sshll.u32 %s367, 4
          %s380 = int_to_ptr.vmem [resolvable:$true] %s379
          %385 = dma.vmem_to_hbm [thread:$0]  %s380, 1024, %s378, %s364, 256, 256, 16
        $region36: #{tpu_custom_call.1} parent=31 // pred_fallthru
          _
      $region32: #{tpu_custom_call.1} parent=5 // pred_fallthru
        _
      %p386 = scmp.le.s32.totalorder 2, %s12
      // Predicated region
      $region37: #{tpu_custom_call.1} parent=5 // pred_check
        %p387 = pneg %p386
      $region38: #{tpu_custom_call.1} parent=5 // pred_check_branch
        %389 = sbr.rel (%p387) target = $region40
      $region39: #{tpu_custom_call.1} parent=5 // pred_region
        %s390 = ssub.s32 %s12, 2
        // Predicated region
        $region41: #{tpu_custom_call.1} parent=39 // pred_check
          %p391 = pneg %p125
        $region42: #{tpu_custom_call.1} parent=39 // pred_check_branch
          %393 = sbr.rel (%p391) target = $region44
        $region43: #{tpu_custom_call.1} parent=39 // pred_region
          %s394 = sand.u32 %s110, 1
          %s395 = scalar_lea.sflag [#allocation3], %s394
          %s396 = sand.u32 %s110, 1
          %s397 = smul.addr %s396, 64
          %s398 = scalar_lea.vmem [#allocation2], %s397
          %399 = dma.done %s395, 1024
        $region44: #{tpu_custom_call.1} parent=39 // pred_fallthru
          _
      $region40: #{tpu_custom_call.1} parent=5 // pred_fallthru
        _
    $region6: #{tpu_custom_call.1} parent=1 // loop_footer
      %s16 = sadd.s32 1, %s12
    $region7: #{tpu_custom_call.1} parent=1 // loop_footer_branch
      %11 = sbr.rel target = $region3
    $region8: #{tpu_custom_call.1} parent=1 // loop_exit
      _
    %400 = vsyncpa [#allocation3], 1
    %s401 = scalar_lea.sflag [#allocation3], 1
    %402 = vsyncpa %s401, 1

</llo_original>
